<compile_context>
chip_gen: v6e
topology: v6e:2x2x1
jax: 0.10.0
libtpu: 0.0.40
codegen_flags: <defaults>
</compile_context>

<pallas_src>
import functools

import jax
import jax.numpy as jnp
from jax import lax
from jax.experimental import pallas as pl
from jax.experimental.pallas import tpu as pltpu

EPS = 1e-6
PRELU_SLOPE = 0.25  # nn.PReLU() created fresh in forward() -> default init


def _ffn_kernel(K, PAD, in_c, out_c,
                x_ref, w1_ref, w2f_ref, w3_ref, pv_ref, o_ref):
    """One batch element: x_ref/o_ref are (in_c, T); weights are resident."""
    T = x_ref.shape[-1]
    x = x_ref[...]                                    # (in_c, T) f32
    pv = pv_ref[...]                                  # (C_max, 9) packed vectors

    def col(j, c):
        # column j of the packed per-channel slab, trimmed to c channels
        return pv[:c, j:j + 1]                        # (c, 1)

    def gn_prelu(h, gamma, beta):
        """GroupNorm(num_groups=1) over the whole (C, T) block + PReLU.

        Fused single-pass stats: one lane reduce of [h ; h*h] gives sum and
        sum-of-squares together.  Values are O(1) in f32 so the
        E[x^2] - mean^2 cancellation is negligible vs the 2e-3 tolerance
        (clamped at 0); use two-pass/Welford if tolerance ever tightens.
        """
        C = h.shape[0]
        inv_n = 1.0 / float(C * h.shape[1])
        stats = jnp.sum(jnp.concatenate([h, h * h], axis=0),
                        axis=1, keepdims=True)        # (2C, 1): one XLU push
        s = jnp.sum(stats[:C])
        ss = jnp.sum(stats[C:])
        mean = s * inv_n
        var = jnp.maximum(ss * inv_n - mean * mean, 0.0)   # biased (PyTorch GN)
        hn = (h - mean) * lax.rsqrt(var + EPS)
        hn = hn * gamma + beta                        # gamma/beta: (C, 1)
        return jnp.where(hn > 0, hn, PRELU_SLOPE * hn)

    # ---- conv1: 1x1 Conv1d == channel matmul, then GroupNorm + PReLU ----
    h1 = jnp.dot(w1_ref[...], x, preferred_element_type=jnp.float32) + col(0, out_c)
    h1 = gn_prelu(h1, col(1, out_c), col(2, out_c))   # (out_c, T)

    # ---- conv2: K-tap 'same' Conv1d via im2col of lane rolls ----
    # out[o, t] = sum_{i,k} w2[o, i, k] * h1[i, t + k - PAD]  (zero padded).
    # Each off-center tap is pltpu.roll (XLU slot) + one edge compare; the K
    # taps are stacked on sublanes and contracted in a single MXU matmul.
    t_idx = lax.broadcasted_iota(jnp.int32, (1, T), 1)
    taps = []
    for k in range(K):                                # static unroll, K = 5
        d = k - PAD
        if d == 0:
            taps.append(h1)                           # center tap: always valid
        else:
            shifted = pltpu.roll(h1, shift=(PAD - k) % T, axis=1)
            mask = (t_idx >= -d) if d < 0 else (t_idx < T - d)
            taps.append(jnp.where(mask, shifted, 0.0))
    stacked = jnp.concatenate(taps, axis=0)           # (K*out_c, T)
    h2 = jnp.dot(w2f_ref[...], stacked,
                 preferred_element_type=jnp.float32) + col(3, out_c)
    h2 = gn_prelu(h2, col(4, out_c), col(5, out_c))
    # Dropout(p=0.0) -> identity

    # ---- conv3: 1x1 Conv1d back to in_c, GroupNorm + PReLU ----
    h3 = jnp.dot(w3_ref[...], h2, preferred_element_type=jnp.float32) + col(6, in_c)
    h3 = gn_prelu(h3, col(7, in_c), col(8, in_c))

    # Dropout(p=0.0) -> identity, residual add
    o_ref[...] = h3 + x


def ffn_pallas(x, params, *, kernel_size=5, padding=2):
    B, c_in, T = x.shape
    (w1, b1, g1, be1, w2, b2, g2, be2, w3, b3, g3, be3) = params
    out_c = w1.shape[0]
    K, PAD = kernel_size, padding
    c_max = max(c_in, out_c)
    f32 = jnp.float32

    # Flatten conv2 weight for im2col: w2f[o, k*out_c + i] = w2[o, i, k].
    w2f = jnp.transpose(w2, (0, 2, 1)).reshape(out_c, K * out_c).astype(f32)

    # Pack the nine per-channel vectors into one (c_max, 9) slab (one DMA).
    def padcol(v):
        v = v.astype(f32)
        return jnp.pad(v, (0, c_max - v.shape[0]))[:, None]

    pvec = jnp.concatenate(
        [padcol(v) for v in (b1, g1, be1, b2, g2, be2, b3, g3, be3)], axis=1)

    kernel = functools.partial(_ffn_kernel, K, PAD, c_in, out_c)

    grid_spec = pltpu.PrefetchScalarGridSpec(
        num_scalar_prefetch=0,
        grid=(B,),
        in_specs=[
            # per-batch activation slab, batch dim squeezed -> kernel sees (c_in, T)
            pl.BlockSpec((None, c_in, T), lambda b: (b, 0, 0)),
            # tiny weights stay resident (constant block index across the grid)
            pl.BlockSpec((out_c, c_in), lambda b: (0, 0)),
            pl.BlockSpec((out_c, K * out_c), lambda b: (0, 0)),
            pl.BlockSpec((c_in, out_c), lambda b: (0, 0)),
            pl.BlockSpec((c_max, 9), lambda b: (0, 0)),
        ],
        out_specs=pl.BlockSpec((None, c_in, T), lambda b: (b, 0, 0)),
    )

    return pl.pallas_call(
        kernel,
        out_shape=jax.ShapeDtypeStruct((B, c_in, T), f32),
        grid_spec=grid_spec,
        compiler_params=pltpu.CompilerParams(
            # batch steps are independent -> both TensorCores on v7x
            dimension_semantics=("parallel",)),
    )(x.astype(f32), w1.astype(f32), w2f, w3.astype(f32), pvec)


# ---------------- pure-JAX reference (PyTorch semantics) ----------------
def ffn_ref(x, params, *, kernel_size=5, padding=2):
    (w1, b1, g1, be1, w2, b2, g2, be2, w3, b3, g3, be3) = params

    def gn_prelu(h, g, b):
        m = h.mean(axis=(1, 2), keepdims=True)
        v = ((h - m) ** 2).mean(axis=(1, 2), keepdims=True)
        hn = (h - m) / jnp.sqrt(v + EPS) * g[None, :, None] + b[None, :, None]
        return jnp.where(hn > 0, hn, PRELU_SLOPE * hn)

    def conv1d(h, w, b, pad):
        y = lax.conv_general_dilated(
            h, w, window_strides=(1,), padding=[(pad, pad)],
            dimension_numbers=('NCH', 'OIH', 'NCH'),
            precision=lax.Precision.HIGHEST)
        return y + b[None, :, None]

    skip = x
    h = gn_prelu(conv1d(x, w1[:, :, None], b1, 0), g1, be1)
    h = gn_prelu(conv1d(h, w2, b2, padding), g2, be2)
    h = gn_prelu(conv1d(h, w3[:, :, None], b3, 0), g3, be3)
    return h + skip


def make_params(key, in_c, out_c, kernel_size):
    ks = jax.random.split(key, 12)
    n = lambda k, shape, s: (s * jax.random.normal(k, shape, jnp.float32))
    w1 = n(ks[0], (out_c, in_c), 0.3)
    b1 = n(ks[1], (out_c,), 0.1)
    g1 = 1.0 + n(ks[2], (out_c,), 0.05)
    be1 = n(ks[3], (out_c,), 0.05)
    w2 = n(ks[4], (out_c, out_c, kernel_size), 0.2)
    b2 = n(ks[5], (out_c,), 0.1)
    g2 = 1.0 + n(ks[6], (out_c,), 0.05)
    be2 = n(ks[7], (out_c,), 0.05)
    w3 = n(ks[8], (in_c, out_c), 0.3)
    b3 = n(ks[9], (in_c,), 0.1)
    g3 = 1.0 + n(ks[10], (in_c,), 0.05)
    be3 = n(ks[11], (in_c,), 0.05)
    return (w1, b1, g1, be1, w2, b2, g2, be2, w3, b3, g3, be3)


if __name__ == "__main__":
    B, IN_C, OUT_C, T = 2, 8, 16, 128
    K, PAD = 5, 2

    key = jax.random.PRNGKey(0)
    kx, kp = jax.random.split(key)
    x = jax.random.normal(kx, (B, IN_C, T), jnp.float32)
    params = make_params(kp, IN_C, OUT_C, K)

    out = ffn_pallas(x, params, kernel_size=K, padding=PAD)
    out = jax.block_until_ready(out)

    ref = jax.block_until_ready(ffn_ref(x, params, kernel_size=K, padding=PAD))
    assert out.shape == (B, IN_C, T) and out.dtype == jnp.float32
    err = float(jnp.max(jnp.abs(out - ref)))
    assert jnp.allclose(out, ref, atol=2e-3, rtol=2e-3), err

    print("KERNEL_OK")
</pallas_src>

<mosaic_0001>
module attributes {stable_mosaic.version = 11 : i64} {
  func.func @_ffn_kernel(%arg0: i32, %arg1: memref<1x8x128xf32, #tpu.memory_space<vmem>>, %arg2: memref<16x8xf32, #tpu.memory_space<vmem>>, %arg3: memref<16x80xf32, #tpu.memory_space<vmem>>, %arg4: memref<8x16xf32, #tpu.memory_space<vmem>>, %arg5: memref<16x9xf32, #tpu.memory_space<vmem>>, %arg6: memref<1x8x128xf32, #tpu.memory_space<vmem>>) attributes {dimension_semantics = [#tpu.dimension_semantics<parallel>], iteration_bounds = array<i64: 2>, scalar_prefetch = 0 : i64, scratch_operands = 0 : i64, tpu.core_type = #tpu.core_type<tc>, window_params = [{transform_indices = @transform_0, window_bounds = array<i64: 1, 8, 128>}, {pipeline_mode = #tpu.pipeline_mode<synchronous>, transform_indices = @transform_1, window_bounds = array<i64: 16, 8>}, {pipeline_mode = #tpu.pipeline_mode<synchronous>, transform_indices = @transform_2, window_bounds = array<i64: 16, 80>}, {pipeline_mode = #tpu.pipeline_mode<synchronous>, transform_indices = @transform_3, window_bounds = array<i64: 8, 16>}, {pipeline_mode = #tpu.pipeline_mode<synchronous>, transform_indices = @transform_4, window_bounds = array<i64: 16, 9>}, {transform_indices = @transform_5, window_bounds = array<i64: 1, 8, 128>}]} {
    %c0 = arith.constant 0 : index
    %c0_0 = arith.constant 0 : index
    %c0_1 = arith.constant 0 : index
    %0 = vector.load %arg1[%c0, %c0_0, %c0_1] : memref<1x8x128xf32, #tpu.memory_space<vmem>>, vector<1x8x128xf32>
    %1 = vector.shape_cast %0 : vector<1x8x128xf32> to vector<8x128xf32>
    %c0_2 = arith.constant 0 : index
    %c0_3 = arith.constant 0 : index
    %2 = vector.load %arg5[%c0_2, %c0_3] : memref<16x9xf32, #tpu.memory_space<vmem>>, vector<16x9xf32>
    %c0_4 = arith.constant 0 : index
    %c0_5 = arith.constant 0 : index
    %3 = vector.load %arg2[%c0_4, %c0_5] : memref<16x8xf32, #tpu.memory_space<vmem>>, vector<16x8xf32>
    %cst = arith.constant dense<0.000000e+00> : vector<16x128xf32>
    %4 = tpu.matmul %3, %1, %cst {dimension_numbers = #tpu.dot_dimension_numbers<[1], [0], [0], [1], [0, 0, 1, 1], [], []>} : vector<16x8xf32>, vector<8x128xf32>, vector<16x128xf32> -> vector<16x128xf32>
    %5 = vector.extract_strided_slice %2 {offsets = [0, 0], sizes = [16, 1], strides = [1, 1]} : vector<16x9xf32> to vector<16x1xf32>
    %6 = vector.broadcast %5 : vector<16x1xf32> to vector<16x128xf32>
    %7 = arith.addf %4, %6 : vector<16x128xf32>
    %8 = vector.extract_strided_slice %2 {offsets = [0, 1], sizes = [16, 1], strides = [1, 1]} : vector<16x9xf32> to vector<16x1xf32>
    %9 = vector.extract_strided_slice %2 {offsets = [0, 2], sizes = [16, 1], strides = [1, 1]} : vector<16x9xf32> to vector<16x1xf32>
    %10 = arith.mulf %7, %7 : vector<16x128xf32>
    %11 = tpu.concatenate %7, %10 in 0 : vector<16x128xf32>, vector<16x128xf32> -> vector<32x128xf32>
    %cst_6 = arith.constant dense<0.000000e+00> : vector<32xf32>
    %12 = vector.multi_reduction <add>, %11, %cst_6 [1] : vector<32x128xf32> to vector<32xf32>
    %13 = vector.shape_cast %12 : vector<32xf32> to vector<32x1xf32>
    %14 = vector.extract_strided_slice %13 {offsets = [0, 0], sizes = [16, 1], strides = [1, 1]} : vector<32x1xf32> to vector<16x1xf32>
    %15 = vector.shape_cast %14 : vector<16x1xf32> to vector<1x16x1xf32>
    %cst_7 = arith.constant dense<0.000000e+00> : vector<1xf32>
    %16 = vector.multi_reduction <add>, %15, %cst_7 [1, 2] : vector<1x16x1xf32> to vector<1xf32>
    %17 = vector.shape_cast %16 : vector<1xf32> to vector<1x1x1xf32>
    %18 = vector.extract %17[0, 0, 0] : f32 from vector<1x1x1xf32>
    %19 = vector.extract_strided_slice %13 {offsets = [16, 0], sizes = [16, 1], strides = [1, 1]} : vector<32x1xf32> to vector<16x1xf32>
    %20 = vector.shape_cast %19 : vector<16x1xf32> to vector<1x16x1xf32>
    %cst_8 = arith.constant dense<0.000000e+00> : vector<1xf32>
    %21 = vector.multi_reduction <add>, %20, %cst_8 [1, 2] : vector<1x16x1xf32> to vector<1xf32>
    %22 = vector.shape_cast %21 : vector<1xf32> to vector<1x1x1xf32>
    %23 = vector.extract %22[0, 0, 0] : f32 from vector<1x1x1xf32>
    %cst_9 = arith.constant 4.8828125E-4 : f32
    %24 = arith.mulf %18, %cst_9 : f32
    %cst_10 = arith.constant 4.8828125E-4 : f32
    %25 = arith.mulf %23, %cst_10 : f32
    %26 = arith.mulf %24, %24 : f32
    %27 = arith.subf %25, %26 : f32
    %cst_11 = arith.constant 0.000000e+00 : f32
    %28 = arith.maximumf %27, %cst_11 : f32
    %29 = vector.broadcast %24 : f32 to vector<16x128xf32>
    %30 = arith.subf %7, %29 : vector<16x128xf32>
    %cst_12 = arith.constant 9.99999997E-7 : f32
    %31 = arith.addf %28, %cst_12 : f32
    %32 = math.rsqrt %31 : f32
    %33 = vector.broadcast %32 : f32 to vector<16x128xf32>
    %34 = arith.mulf %30, %33 : vector<16x128xf32>
    %35 = vector.broadcast %8 : vector<16x1xf32> to vector<16x128xf32>
    %36 = arith.mulf %34, %35 : vector<16x128xf32>
    %37 = vector.broadcast %9 : vector<16x1xf32> to vector<16x128xf32>
    %38 = arith.addf %36, %37 : vector<16x128xf32>
    %cst_13 = arith.constant 0.000000e+00 : f32
    %39 = vector.broadcast %cst_13 : f32 to vector<16x128xf32>
    %40 = arith.cmpf ogt, %38, %39 : vector<16x128xf32>
    %cst_14 = arith.constant 2.500000e-01 : f32
    %41 = vector.broadcast %cst_14 : f32 to vector<16x128xf32>
    %42 = arith.mulf %41, %38 : vector<16x128xf32>
    %43 = arith.select %40, %38, %42 : vector<16x128xi1>, vector<16x128xf32>
    %44 = tpu.iota {dimensions = array<i32: 1>} : vector<1x128xi32>
    %c2_i32 = arith.constant 2 : i32
    %45 = tpu.dynamic_rotate %43 by %c2_i32 dim 1 : vector<16x128xf32>, i32 -> vector<16x128xf32>
    %c2_i32_15 = arith.constant 2 : i32
    %46 = vector.broadcast %c2_i32_15 : i32 to vector<1x128xi32>
    %47 = arith.cmpi sge, %44, %46 : vector<1x128xi32>
    %cst_16 = arith.constant 0.000000e+00 : f32
    %48 = vector.shape_cast %47 : vector<1x128xi1> to vector<1x128xi1>
    %49 = vector.broadcast %48 : vector<1x128xi1> to vector<16x128xi1>
    %50 = vector.broadcast %cst_16 : f32 to vector<16x128xf32>
    %51 = arith.select %49, %45, %50 : vector<16x128xi1>, vector<16x128xf32>
    %c1_i32 = arith.constant 1 : i32
    %52 = tpu.dynamic_rotate %43 by %c1_i32 dim 1 : vector<16x128xf32>, i32 -> vector<16x128xf32>
    %c1_i32_17 = arith.constant 1 : i32
    %53 = vector.broadcast %c1_i32_17 : i32 to vector<1x128xi32>
    %54 = arith.cmpi sge, %44, %53 : vector<1x128xi32>
    %cst_18 = arith.constant 0.000000e+00 : f32
    %55 = vector.shape_cast %54 : vector<1x128xi1> to vector<1x128xi1>
    %56 = vector.broadcast %55 : vector<1x128xi1> to vector<16x128xi1>
    %57 = vector.broadcast %cst_18 : f32 to vector<16x128xf32>
    %58 = arith.select %56, %52, %57 : vector<16x128xi1>, vector<16x128xf32>
    %c127_i32 = arith.constant 127 : i32
    %59 = tpu.dynamic_rotate %43 by %c127_i32 dim 1 : vector<16x128xf32>, i32 -> vector<16x128xf32>
    %c127_i32_19 = arith.constant 127 : i32
    %60 = vector.broadcast %c127_i32_19 : i32 to vector<1x128xi32>
    %61 = arith.cmpi slt, %44, %60 : vector<1x128xi32>
    %cst_20 = arith.constant 0.000000e+00 : f32
    %62 = vector.shape_cast %61 : vector<1x128xi1> to vector<1x128xi1>
    %63 = vector.broadcast %62 : vector<1x128xi1> to vector<16x128xi1>
    %64 = vector.broadcast %cst_20 : f32 to vector<16x128xf32>
    %65 = arith.select %63, %59, %64 : vector<16x128xi1>, vector<16x128xf32>
    %c126_i32 = arith.constant 126 : i32
    %66 = tpu.dynamic_rotate %43 by %c126_i32 dim 1 : vector<16x128xf32>, i32 -> vector<16x128xf32>
    %c126_i32_21 = arith.constant 126 : i32
    %67 = vector.broadcast %c126_i32_21 : i32 to vector<1x128xi32>
    %68 = arith.cmpi slt, %44, %67 : vector<1x128xi32>
    %cst_22 = arith.constant 0.000000e+00 : f32
    %69 = vector.shape_cast %68 : vector<1x128xi1> to vector<1x128xi1>
    %70 = vector.broadcast %69 : vector<1x128xi1> to vector<16x128xi1>
    %71 = vector.broadcast %cst_22 : f32 to vector<16x128xf32>
    %72 = arith.select %70, %66, %71 : vector<16x128xi1>, vector<16x128xf32>
    %73 = tpu.concatenate %51, %58, %43, %65, %72 in 0 : vector<16x128xf32>, vector<16x128xf32>, vector<16x128xf32>, vector<16x128xf32>, vector<16x128xf32> -> vector<80x128xf32>
    %c0_23 = arith.constant 0 : index
    %c0_24 = arith.constant 0 : index
    %74 = vector.load %arg3[%c0_23, %c0_24] : memref<16x80xf32, #tpu.memory_space<vmem>>, vector<16x80xf32>
    %cst_25 = arith.constant dense<0.000000e+00> : vector<16x128xf32>
    %75 = tpu.matmul %74, %73, %cst_25 {dimension_numbers = #tpu.dot_dimension_numbers<[1], [0], [0], [1], [0, 0, 1, 1], [], []>} : vector<16x80xf32>, vector<80x128xf32>, vector<16x128xf32> -> vector<16x128xf32>
    %76 = vector.extract_strided_slice %2 {offsets = [0, 3], sizes = [16, 1], strides = [1, 1]} : vector<16x9xf32> to vector<16x1xf32>
    %77 = vector.broadcast %76 : vector<16x1xf32> to vector<16x128xf32>
    %78 = arith.addf %75, %77 : vector<16x128xf32>
    %79 = vector.extract_strided_slice %2 {offsets = [0, 4], sizes = [16, 1], strides = [1, 1]} : vector<16x9xf32> to vector<16x1xf32>
    %80 = vector.extract_strided_slice %2 {offsets = [0, 5], sizes = [16, 1], strides = [1, 1]} : vector<16x9xf32> to vector<16x1xf32>
    %81 = arith.mulf %78, %78 : vector<16x128xf32>
    %82 = tpu.concatenate %78, %81 in 0 : vector<16x128xf32>, vector<16x128xf32> -> vector<32x128xf32>
    %cst_26 = arith.constant dense<0.000000e+00> : vector<32xf32>
    %83 = vector.multi_reduction <add>, %82, %cst_26 [1] : vector<32x128xf32> to vector<32xf32>
    %84 = vector.shape_cast %83 : vector<32xf32> to vector<32x1xf32>
    %85 = vector.extract_strided_slice %84 {offsets = [0, 0], sizes = [16, 1], strides = [1, 1]} : vector<32x1xf32> to vector<16x1xf32>
    %86 = vector.shape_cast %85 : vector<16x1xf32> to vector<1x16x1xf32>
    %cst_27 = arith.constant dense<0.000000e+00> : vector<1xf32>
    %87 = vector.multi_reduction <add>, %86, %cst_27 [1, 2] : vector<1x16x1xf32> to vector<1xf32>
    %88 = vector.shape_cast %87 : vector<1xf32> to vector<1x1x1xf32>
    %89 = vector.extract %88[0, 0, 0] : f32 from vector<1x1x1xf32>
    %90 = vector.extract_strided_slice %84 {offsets = [16, 0], sizes = [16, 1], strides = [1, 1]} : vector<32x1xf32> to vector<16x1xf32>
    %91 = vector.shape_cast %90 : vector<16x1xf32> to vector<1x16x1xf32>
    %cst_28 = arith.constant dense<0.000000e+00> : vector<1xf32>
    %92 = vector.multi_reduction <add>, %91, %cst_28 [1, 2] : vector<1x16x1xf32> to vector<1xf32>
    %93 = vector.shape_cast %92 : vector<1xf32> to vector<1x1x1xf32>
    %94 = vector.extract %93[0, 0, 0] : f32 from vector<1x1x1xf32>
    %cst_29 = arith.constant 4.8828125E-4 : f32
    %95 = arith.mulf %89, %cst_29 : f32
    %cst_30 = arith.constant 4.8828125E-4 : f32
    %96 = arith.mulf %94, %cst_30 : f32
    %97 = arith.mulf %95, %95 : f32
    %98 = arith.subf %96, %97 : f32
    %cst_31 = arith.constant 0.000000e+00 : f32
    %99 = arith.maximumf %98, %cst_31 : f32
    %100 = vector.broadcast %95 : f32 to vector<16x128xf32>
    %101 = arith.subf %78, %100 : vector<16x128xf32>
    %cst_32 = arith.constant 9.99999997E-7 : f32
    %102 = arith.addf %99, %cst_32 : f32
    %103 = math.rsqrt %102 : f32
    %104 = vector.broadcast %103 : f32 to vector<16x128xf32>
    %105 = arith.mulf %101, %104 : vector<16x128xf32>
    %106 = vector.broadcast %79 : vector<16x1xf32> to vector<16x128xf32>
    %107 = arith.mulf %105, %106 : vector<16x128xf32>
    %108 = vector.broadcast %80 : vector<16x1xf32> to vector<16x128xf32>
    %109 = arith.addf %107, %108 : vector<16x128xf32>
    %cst_33 = arith.constant 0.000000e+00 : f32
    %110 = vector.broadcast %cst_33 : f32 to vector<16x128xf32>
    %111 = arith.cmpf ogt, %109, %110 : vector<16x128xf32>
    %cst_34 = arith.constant 2.500000e-01 : f32
    %112 = vector.broadcast %cst_34 : f32 to vector<16x128xf32>
    %113 = arith.mulf %112, %109 : vector<16x128xf32>
    %114 = arith.select %111, %109, %113 : vector<16x128xi1>, vector<16x128xf32>
    %c0_35 = arith.constant 0 : index
    %c0_36 = arith.constant 0 : index
    %115 = vector.load %arg4[%c0_35, %c0_36] : memref<8x16xf32, #tpu.memory_space<vmem>>, vector<8x16xf32>
    %cst_37 = arith.constant dense<0.000000e+00> : vector<8x128xf32>
    %116 = tpu.matmul %115, %114, %cst_37 {dimension_numbers = #tpu.dot_dimension_numbers<[1], [0], [0], [1], [0, 0, 1, 1], [], []>} : vector<8x16xf32>, vector<16x128xf32>, vector<8x128xf32> -> vector<8x128xf32>
    %117 = vector.extract_strided_slice %2 {offsets = [0, 6], sizes = [8, 1], strides = [1, 1]} : vector<16x9xf32> to vector<8x1xf32>
    %118 = vector.broadcast %117 : vector<8x1xf32> to vector<8x128xf32>
    %119 = arith.addf %116, %118 : vector<8x128xf32>
    %120 = vector.extract_strided_slice %2 {offsets = [0, 7], sizes = [8, 1], strides = [1, 1]} : vector<16x9xf32> to vector<8x1xf32>
    %121 = vector.extract_strided_slice %2 {offsets = [0, 8], sizes = [8, 1], strides = [1, 1]} : vector<16x9xf32> to vector<8x1xf32>
    %122 = arith.mulf %119, %119 : vector<8x128xf32>
    %123 = tpu.concatenate %119, %122 in 0 : vector<8x128xf32>, vector<8x128xf32> -> vector<16x128xf32>
    %cst_38 = arith.constant dense<0.000000e+00> : vector<16xf32>
    %124 = vector.multi_reduction <add>, %123, %cst_38 [1] : vector<16x128xf32> to vector<16xf32>
    %125 = vector.shape_cast %124 : vector<16xf32> to vector<16x1xf32>
    %126 = vector.extract_strided_slice %125 {offsets = [0, 0], sizes = [8, 1], strides = [1, 1]} : vector<16x1xf32> to vector<8x1xf32>
    %127 = vector.shape_cast %126 : vector<8x1xf32> to vector<1x8x1xf32>
    %cst_39 = arith.constant dense<0.000000e+00> : vector<1xf32>
    %128 = vector.multi_reduction <add>, %127, %cst_39 [1, 2] : vector<1x8x1xf32> to vector<1xf32>
    %129 = vector.shape_cast %128 : vector<1xf32> to vector<1x1x1xf32>
    %130 = vector.extract %129[0, 0, 0] : f32 from vector<1x1x1xf32>
    %131 = vector.extract_strided_slice %125 {offsets = [8, 0], sizes = [8, 1], strides = [1, 1]} : vector<16x1xf32> to vector<8x1xf32>
    %132 = vector.shape_cast %131 : vector<8x1xf32> to vector<1x8x1xf32>
    %cst_40 = arith.constant dense<0.000000e+00> : vector<1xf32>
    %133 = vector.multi_reduction <add>, %132, %cst_40 [1, 2] : vector<1x8x1xf32> to vector<1xf32>
    %134 = vector.shape_cast %133 : vector<1xf32> to vector<1x1x1xf32>
    %135 = vector.extract %134[0, 0, 0] : f32 from vector<1x1x1xf32>
    %cst_41 = arith.constant 9.765625E-4 : f32
    %136 = arith.mulf %130, %cst_41 : f32
    %cst_42 = arith.constant 9.765625E-4 : f32
    %137 = arith.mulf %135, %cst_42 : f32
    %138 = arith.mulf %136, %136 : f32
    %139 = arith.subf %137, %138 : f32
    %cst_43 = arith.constant 0.000000e+00 : f32
    %140 = arith.maximumf %139, %cst_43 : f32
    %141 = vector.broadcast %136 : f32 to vector<8x128xf32>
    %142 = arith.subf %119, %141 : vector<8x128xf32>
    %cst_44 = arith.constant 9.99999997E-7 : f32
    %143 = arith.addf %140, %cst_44 : f32
    %144 = math.rsqrt %143 : f32
    %145 = vector.broadcast %144 : f32 to vector<8x128xf32>
    %146 = arith.mulf %142, %145 : vector<8x128xf32>
    %147 = vector.broadcast %120 : vector<8x1xf32> to vector<8x128xf32>
    %148 = arith.mulf %146, %147 : vector<8x128xf32>
    %149 = vector.broadcast %121 : vector<8x1xf32> to vector<8x128xf32>
    %150 = arith.addf %148, %149 : vector<8x128xf32>
    %cst_45 = arith.constant 0.000000e+00 : f32
    %151 = vector.broadcast %cst_45 : f32 to vector<8x128xf32>
    %152 = arith.cmpf ogt, %150, %151 : vector<8x128xf32>
    %cst_46 = arith.constant 2.500000e-01 : f32
    %153 = vector.broadcast %cst_46 : f32 to vector<8x128xf32>
    %154 = arith.mulf %153, %150 : vector<8x128xf32>
    %155 = arith.select %152, %150, %154 : vector<8x128xi1>, vector<8x128xf32>
    %156 = arith.addf %155, %1 : vector<8x128xf32>
    %c0_47 = arith.constant 0 : index
    %c0_48 = arith.constant 0 : index
    %c0_49 = arith.constant 0 : index
    %157 = vector.load %arg6[%c0_47, %c0_48, %c0_49] : memref<1x8x128xf32, #tpu.memory_space<vmem>>, vector<1x8x128xf32>
    %158 = vector.shape_cast %157 : vector<1x8x128xf32> to vector<8x128xf32>
    %159 = vector.shape_cast %156 : vector<8x128xf32> to vector<1x8x128xf32>
    tpu.vector_store %arg6[%c0_47, %c0_48, %c0_49], %159 {strides = array<i32>} : memref<1x8x128xf32, #tpu.memory_space<vmem>>, vector<1x8x128xf32>,
    return
  }
  func.func @transform_0(%arg0: i32) -> (i32, i32, i32) {
    %c0_i32 = arith.constant 0 : i32
    %c0_i32_0 = arith.constant 0 : i32
    %c0_i32_1 = arith.constant 0 : i32
    return %arg0, %c0_i32, %c0_i32_0 : i32, i32, i32
  }
  func.func @transform_1(%arg0: i32) -> (i32, i32) {
    %c0_i32 = arith.constant 0 : i32
    %c0_i32_0 = arith.constant 0 : i32
    %c0_i32_1 = arith.constant 0 : i32
    return %c0_i32, %c0_i32_0 : i32, i32
  }
  func.func @transform_2(%arg0: i32) -> (i32, i32) {
    %c0_i32 = arith.constant 0 : i32
    %c0_i32_0 = arith.constant 0 : i32
    %c0_i32_1 = arith.constant 0 : i32
    return %c0_i32, %c0_i32_0 : i32, i32
  }
  func.func @transform_3(%arg0: i32) -> (i32, i32) {
    %c0_i32 = arith.constant 0 : i32
    %c0_i32_0 = arith.constant 0 : i32
    %c0_i32_1 = arith.constant 0 : i32
    return %c0_i32, %c0_i32_0 : i32, i32
  }
  func.func @transform_4(%arg0: i32) -> (i32, i32) {
    %c0_i32 = arith.constant 0 : i32
    %c0_i32_0 = arith.constant 0 : i32
    %c0_i32_1 = arith.constant 0 : i32
    return %c0_i32, %c0_i32_0 : i32, i32
  }
  func.func @transform_5(%arg0: i32) -> (i32, i32, i32) {
    %c0_i32 = arith.constant 0 : i32
    %c0_i32_0 = arith.constant 0 : i32
    %c0_i32_1 = arith.constant 0 : i32
    return %arg0, %c0_i32, %c0_i32_0 : i32, i32, i32
  }
}

</mosaic_0001>

<llo_original>
// kernel: tpu_custom_call.1
$region0: #{tpu_custom_call.1}
  #allocation0 [shape = 'u32[]', space=smem, size = 0x4, offset = 0x4, fixed_abs, tag = 'smem constant byte address 0x4 - core index']
  #allocation1 [shape = 'u32[144,128]{1,0:T(1,128)}', space=vmem, size = 0x12000, scoped, tag = 'internal scratch']
  %s0 = inlined_call_operand.vmem [shape: f32[2,8,128], index: 0, kind: input, shape index: {}]
  %s1 = inlined_call_operand.vmem [shape: f32[16,8], index: 1, kind: input, shape index: {}]
  %s2 = inlined_call_operand.hbm [shape: f32[16,80], index: 2, kind: input, shape index: {}]
  %s3 = inlined_call_operand.vmem [shape: f32[8,16], index: 3, kind: input, shape index: {}]
  %s4 = inlined_call_operand.hbm [shape: f32[16,9], index: 4, kind: input, shape index: {}]
  %s5 = inlined_call_operand.hbm [shape: f32[2,8,128], index: 5, kind: output, shape index: {}]
  %s6 = sld [smem:[#allocation0]]
  $region61: #{tpu_custom_call.1} parent=0
    _
  %s8 = ssub.s32 1, %s6
  %s9 = scalar_select 0, %s8, %s6
  $region1: #{tpu_custom_call.1} parent=0
    #allocation2 [shape = 'u8[8192]{0}', space=vmem, size = 0x2000, scoped, tag = 'input window, operand 2, single buffered']
    #allocation3 [shape = 's32[2]{0}', space=sflag, size = 0x8, scoped, tag = 'scoped memory for tpu_custom_call.1']
    #allocation4 [shape = 's32[2]{0}', space=sflag, size = 0x8, scoped, tag = 'scoped memory for tpu_custom_call.1']
    #allocation5 [shape = 'u8[8192]{0}', space=vmem, size = 0x2000, scoped, tag = 'input window, operand 4, single buffered']
    #allocation6 [shape = 's32[1]{0}', space=sflag, size = 0x4, scoped, tag = 'scoped memory for tpu_custom_call.1']
    #allocation7 [shape = 'u8[8192]{0}', space=vmem, size = 0x2000, scoped, tag = 'output window, operand 0']
    %10 = vsyncpa [#allocation3], 0
    %11 = vsyncpa [#allocation6], 0
    %12 = vsyncpa [#allocation4], 0
    %s13 = scalar_lea.sflag [#allocation4], 1
    %14 = vsyncpa %s13, 0
    loop: start=0, step=1, limit=4
    $region2: #{tpu_custom_call.1} parent=1 // loop_pre_header
      _
    $region3: #{tpu_custom_call.1} parent=1 // loop_header
      %s16 = sphi 0, %s20
      %p17 = scmp.ge.s32.totalorder %s16, 4
      %s26 = sphi 0, %s28
      %s29 = sphi 0, %s26
      %s30 = sphi 0, %s29
      %s46 = sphi 0, %s30
      %s50 = sphi 0, %s50
      %s52 = sphi 0, %s50
      %s53 = sphi 0, %s52
      %s67 = sphi 0, %s53
      %s71 = sphi 0, %s71
      %s73 = sphi 0, %s71
      %s74 = sphi 0, %s73
      %s88 = sphi 0, %s74
      %s92 = sphi 0, %s92
      %s94 = sphi 0, %s92
      %s95 = sphi 0, %s94
      %s109 = sphi 0, %s95
      %s113 = sphi 0, %s113
      %s115 = sphi 0, %s113
      %s116 = sphi 0, %s115
      %s130 = sphi 0, %s116
      %s136 = sphi 0, %s138
      %s139 = sphi 0, %s136
      %s140 = sphi 0, %s139
      %s156 = sphi 0, %s140
    $region4: #{tpu_custom_call.1} parent=1 // loop_header_branch
      %19 = sbr.rel (%p17) target = $region8
    $region5: #{tpu_custom_call.1} parent=1 // loop_body
      %s21 = ssub.s32 %s16, 1
      %s22 = ssub.s32 %s16, 2
      %s23 = sadd.s32 %s16, 1
      %s24 = ssub.s32 %s16, %s23
      %p25 = scmp.eq.s32.totalorder %s24, 0
      %s27 = sadd.s32 %s26, 1
      %s28 = scalar_select %p25, %s26, %s27
      %p31 = pneg %p25
      %p32 = scmp.eq.s32.totalorder %s16, 1
      %p33 = por %p31, %p32
      %p34 = scmp.ne.s32.totalorder %s26, %s29
      %p35 = scmp.eq.s32.totalorder %s16, 0
      %p36 = por %p34, %p35
      %p37 = scmp.ne.s32.totalorder %s26, %s29
      %p38 = scmp.eq.s32.totalorder %s21, 1
      %p39 = por %p37, %p38
      %p40 = scmp.ne.s32.totalorder %s29, %s30
      %p41 = scmp.eq.s32.totalorder %s21, 0
      %p42 = por %p40, %p41
      %p43 = scmp.ne.s32.totalorder %s29, %s30
      %p44 = scmp.eq.s32.totalorder %s22, 1
      %p45 = por %p43, %p44
      %p47 = scmp.ne.s32.totalorder %s30, %s46
      %p48 = scmp.eq.s32.totalorder %s22, 0
      %p49 = por %p47, %p48
      %s51 = sadd.s32 %s50, 1
      %p54 = scmp.eq.s32.totalorder %s16, 1
      %p55 = scmp.ne.s32.totalorder %s50, %s52
      %p56 = scmp.eq.s32.totalorder %s16, 0
      %p57 = por %p55, %p56
      %p58 = scmp.ne.s32.totalorder %s50, %s52
      %p59 = scmp.eq.s32.totalorder %s21, 1
      %p60 = por %p58, %p59
      %p61 = scmp.ne.s32.totalorder %s52, %s53
      %p62 = scmp.eq.s32.totalorder %s21, 0
      %p63 = por %p61, %p62
      %p64 = scmp.ne.s32.totalorder %s52, %s53
      %p65 = scmp.eq.s32.totalorder %s22, 1
      %p66 = por %p64, %p65
      %p68 = scmp.ne.s32.totalorder %s53, %s67
      %p69 = scmp.eq.s32.totalorder %s22, 0
      %p70 = por %p68, %p69
      %s72 = sadd.s32 %s71, 1
      %p75 = scmp.eq.s32.totalorder %s16, 1
      %p76 = scmp.ne.s32.totalorder %s71, %s73
      %p77 = scmp.eq.s32.totalorder %s16, 0
      %p78 = por %p76, %p77
      %p79 = scmp.ne.s32.totalorder %s71, %s73
      %p80 = scmp.eq.s32.totalorder %s21, 1
      %p81 = por %p79, %p80
      %p82 = scmp.ne.s32.totalorder %s73, %s74
      %p83 = scmp.eq.s32.totalorder %s21, 0
      %p84 = por %p82, %p83
      %p85 = scmp.ne.s32.totalorder %s73, %s74
      %p86 = scmp.eq.s32.totalorder %s22, 1
      %p87 = por %p85, %p86
      %p89 = scmp.ne.s32.totalorder %s74, %s88
      %p90 = scmp.eq.s32.totalorder %s22, 0
      %p91 = por %p89, %p90
      %s93 = sadd.s32 %s92, 1
      %p96 = scmp.eq.s32.totalorder %s16, 1
      %p97 = scmp.ne.s32.totalorder %s92, %s94
      %p98 = scmp.eq.s32.totalorder %s16, 0
      %p99 = por %p97, %p98
      %p100 = scmp.ne.s32.totalorder %s92, %s94
      %p101 = scmp.eq.s32.totalorder %s21, 1
      %p102 = por %p100, %p101
      %p103 = scmp.ne.s32.totalorder %s94, %s95
      %p104 = scmp.eq.s32.totalorder %s21, 0
      %p105 = por %p103, %p104
      %p106 = scmp.ne.s32.totalorder %s94, %s95
      %p107 = scmp.eq.s32.totalorder %s22, 1
      %p108 = por %p106, %p107
      %p110 = scmp.ne.s32.totalorder %s95, %s109
      %p111 = scmp.eq.s32.totalorder %s22, 0
      %p112 = por %p110, %p111
      %s114 = sadd.s32 %s113, 1
      %p117 = scmp.eq.s32.totalorder %s16, 1
      %p118 = scmp.ne.s32.totalorder %s113, %s115
      %p119 = scmp.eq.s32.totalorder %s16, 0
      %p120 = por %p118, %p119
      %p121 = scmp.ne.s32.totalorder %s113, %s115
      %p122 = scmp.eq.s32.totalorder %s21, 1
      %p123 = por %p121, %p122
      %p124 = scmp.ne.s32.totalorder %s115, %s116
      %p125 = scmp.eq.s32.totalorder %s21, 0
      %p126 = por %p124, %p125
      %p127 = scmp.ne.s32.totalorder %s115, %s116
      %p128 = scmp.eq.s32.totalorder %s22, 1
      %p129 = por %p127, %p128
      %p131 = scmp.ne.s32.totalorder %s116, %s130
      %p132 = scmp.eq.s32.totalorder %s22, 0
      %p133 = por %p131, %p132
      %s134 = ssub.s32 %s16, %s23
      %p135 = scmp.eq.s32.totalorder %s134, 0
      %s137 = sadd.s32 %s136, 1
      %s138 = scalar_select %p135, %s136, %s137
      %p141 = pneg %p135
      %p142 = scmp.eq.s32.totalorder %s16, 1
      %p143 = por %p141, %p142
      %p144 = scmp.ne.s32.totalorder %s136, %s139
      %p145 = scmp.eq.s32.totalorder %s16, 0
      %p146 = por %p144, %p145
      %p147 = scmp.ne.s32.totalorder %s136, %s139
      %p148 = scmp.eq.s32.totalorder %s21, 1
      %p149 = por %p147, %p148
      %p150 = scmp.ne.s32.totalorder %s139, %s140
      %p151 = scmp.eq.s32.totalorder %s21, 0
      %p152 = por %p150, %p151
      %p153 = scmp.ne.s32.totalorder %s139, %s140
      %p154 = scmp.eq.s32.totalorder %s22, 1
      %p155 = por %p153, %p154
      %p157 = scmp.ne.s32.totalorder %s140, %s156
      %p158 = scmp.eq.s32.totalorder %s22, 0
      %p159 = por %p157, %p158
      %p160 = scmp.le.s32.totalorder 1, %s16
      %p161 = scmp.lt.s32.totalorder %s16, 3
      %p162 = pnand %p160, %p161
      %p163 = pneg %p162
      // Predicated region
      $region9: #{tpu_custom_call.1} parent=5 // pred_check
        _
      $region10: #{tpu_custom_call.1} parent=5 // pred_check_branch
        %165 = sbr.rel (%p162) target = $region12
      $region11: #{tpu_custom_call.1} parent=5 // pred_region
        %s166 = ssub.s32 %s16, 1
        // Predicated region
        $region13: #{tpu_custom_call.1} parent=11 // pred_check
          %p167 = pneg %p63
        $region14: #{tpu_custom_call.1} parent=11 // pred_check_branch
          %169 = sbr.rel (%p167) target = $region16
        $region15: #{tpu_custom_call.1} parent=11 // pred_region
          _
        $region16: #{tpu_custom_call.1} parent=11 // pred_fallthru
          _
        // Predicated region
        $region17: #{tpu_custom_call.1} parent=11 // pred_check
          %p170 = pneg %p84
        $region18: #{tpu_custom_call.1} parent=11 // pred_check_branch
          %172 = sbr.rel (%p170) target = $region20
        $region19: #{tpu_custom_call.1} parent=11 // pred_region
          %s174 = ssub.s32 256, 256
          %175 = vsyncadd [#allocation3], %s174
          %s176 = sshll.u32 [#allocation2], 4
          %s177 = int_to_ptr.vmem [resolvable:$true] %s176
          %182 = dma.hbm_to_vmem [thread:$0]  %s2, 256, %s177, [#allocation3], 128, 128, 8
        $region20: #{tpu_custom_call.1} parent=11 // pred_fallthru
          _
        // Predicated region
        $region21: #{tpu_custom_call.1} parent=11 // pred_check
          %p183 = pneg %p105
        $region22: #{tpu_custom_call.1} parent=11 // pred_check_branch
          %185 = sbr.rel (%p183) target = $region24
        $region23: #{tpu_custom_call.1} parent=11 // pred_region
          _
        $region24: #{tpu_custom_call.1} parent=11 // pred_fallthru
          _
        // Predicated region
        $region25: #{tpu_custom_call.1} parent=11 // pred_check
          %p186 = pneg %p126
        $region26: #{tpu_custom_call.1} parent=11 // pred_check_branch
          %188 = sbr.rel (%p186) target = $region28
        $region27: #{tpu_custom_call.1} parent=11 // pred_region
          %s190 = ssub.s32 256, 256
          %191 = vsyncadd [#allocation6], %s190
          %s192 = sshll.u32 [#allocation5], 4
          %s193 = int_to_ptr.vmem [resolvable:$true] %s192
          %198 = dma.hbm_to_vmem [thread:$0]  %s4, 256, %s193, [#allocation6], 128, 128, 8
        $region28: #{tpu_custom_call.1} parent=11 // pred_fallthru
          _
      $region12: #{tpu_custom_call.1} parent=5 // pred_fallthru
        _
      %p199 = scmp.lt.s32.totalorder %s16, 2
      // Predicated region
      $region29: #{tpu_custom_call.1} parent=5 // pred_check
        %p200 = pneg %p199
      $region30: #{tpu_custom_call.1} parent=5 // pred_check_branch
        %202 = sbr.rel (%p200) target = $region32
      $region31: #{tpu_custom_call.1} parent=5 // pred_region
        // Predicated region
        $region33: #{tpu_custom_call.1} parent=31 // pred_check
          %p203 = pneg %p36
        $region34: #{tpu_custom_call.1} parent=31 // pred_check_branch
          %205 = sbr.rel (%p203) target = $region36
        $region35: #{tpu_custom_call.1} parent=31 // pred_region
          %p206 = scmp.lt.s32.totalorder %s16, 1
          %s207 = scalar_select %p206, %s16, 1
          %s208 = smul.addr %s207, 8
          %s209 = scalar_lea.vmem %s0, %s208
        $region36: #{tpu_custom_call.1} parent=31 // pred_fallthru
          _
      $region32: #{tpu_custom_call.1} parent=5 // pred_fallthru
        _
      %p210 = scmp.le.s32.totalorder 1, %s16
      %p211 = scmp.lt.s32.totalorder %s16, 3
      %p212 = pnand %p210, %p211
      %p213 = pneg %p212
      // Predicated region
      $region37: #{tpu_custom_call.1} parent=5 // pred_check
        _
      $region38: #{tpu_custom_call.1} parent=5 // pred_check_branch
        %215 = sbr.rel (%p212) target = $region40
      $region39: #{tpu_custom_call.1} parent=5 // pred_region
        %s216 = ssub.s32 %s16, 1
        // Predicated region
        $region41: #{tpu_custom_call.1} parent=39 // pred_check
          %p217 = pneg %p84
        $region42: #{tpu_custom_call.1} parent=39 // pred_check_branch
          %219 = sbr.rel (%p217) target = $region44
        $region43: #{tpu_custom_call.1} parent=39 // pred_region
          %220 = dma.done [#allocation3], 256
        $region44: #{tpu_custom_call.1} parent=39 // pred_fallthru
          _
        // Predicated region
        $region45: #{tpu_custom_call.1} parent=39 // pred_check
          %p221 = pneg %p126
        $region46: #{tpu_custom_call.1} parent=39 // pred_check_branch
          %223 = sbr.rel (%p221) target = $region48
        $region47: #{tpu_custom_call.1} parent=39 // pred_region
          %224 = dma.done [#allocation6], 256
        $region48: #{tpu_custom_call.1} parent=39 // pred_fallthru
          _
        %p225 = scmp.lt.s32.totalorder %s21, 1
        %s226 = scalar_select %p225, %s21, 1
        %s227 = smul.addr %s226, 8
        %s228 = scalar_lea.vmem %s0, %s227
        %p229 = pneg %p42
        %p230 = pneg %p39
        %p231 = pneg %p63
        %p232 = pneg %p60
        %p233 = pneg %p84
        %p234 = pneg %p81
        %p235 = pneg %p105
        %p236 = pneg %p102
        %p237 = pneg %p126
        %p238 = pneg %p123
        %p239 = pneg %p152
        %p240 = pneg %p149
        %s241 = sand.u32 %s139, 1
        %s242 = scalar_lea.sflag [#allocation4], %s241
        %s243 = sand.u32 %s139, 1
        %s244 = smul.addr %s243, 8
        %s245 = scalar_lea.vmem [#allocation7], %s244
        %p246 = scmp.lt.s32.totalorder %s21, 1
        %s247 = scalar_select %p246, %s21, 1
        %s248 = smul.addr %s247, 8
        %s249 = scalar_lea.vmem %s0, %s248
        %v250 = vld [vmem:[%s249] sm:$0xff]
        %v251 = vld [vmem:[#allocation5] sm:$0xff]
        %v252 = vld [vmem:[#allocation5 + $0x8] sm:$0xff]
        %v253 = vld [vmem:[%s1] sm:$0xff]
        %v254 = vld [vmem:[%s1 + $0x8] sm:$0xff]
        %256 = vset.pattern.permute.xlu0 0
        %257 = vperm.xlu0 %256, %v251
        %v258 = vpop.permute.xlu0 %257
        %261 = vset.pattern.permute.xlu0 0
        %262 = vperm.xlu0 %261, %v252
        %v263 = vpop.permute.xlu0 %262
        %vm265 = vcmask 64512
        %v267 = vsel %vm265, %v253, 0
        %v270 = vsel %vm265, %v254, 0
        %272 = vmatprep.subr.mxu0 0.0
        %273 = vmatpush1.msra.mxu0 0.0
        %274 = vmatprep.subr.mxu0 0.0
        %275 = vmatpush1.msra.mxu0 0.0
        %276 = vmatprep.subr.mxu0 0.0
        %277 = vmatpush1.msra.mxu0 0.0
        %278 = vmatprep.subr.mxu0 0.0
        %279 = vmatpush1.msra.mxu0 0.0
        %280 = vmatprep.subr.mxu0 0.0
        %281 = vmatpush1.msra.mxu0 0.0
        %282 = vmatprep.subr.mxu0 0.0
        %283 = vmatpush1.msra.mxu0 0.0
        %284 = vmatprep.subr.mxu0 0.0
        %285 = vmatpush1.msra.mxu0 0.0
        %286 = vmatprep.subr.mxu0 0.0
        %287 = vmatpush1.msra.mxu0 0.0
        %288 = vmatprep.subr.mxu0 0.0
        %289 = vmatpush1.msra.mxu0 0.0
        %290 = vmatprep.subr.mxu0 0.0
        %291 = vmatpush1.msra.mxu0 0.0
        %292 = vmatprep.subr.mxu0 0.0
        %293 = vmatpush1.msra.mxu0 0.0
        %294 = vmatprep.subr.mxu0 0.0
        %295 = vmatpush1.msra.mxu0 0.0
        %296 = vmatprep.subr.mxu0 0.0
        %297 = vmatpush1.msra.mxu0 0.0
        %298 = vmatprep.subr.mxu0 0.0
        %299 = vmatpush1.msra.mxu0 0.0
        %300 = vmatprep.subr.mxu0 0.0
        %301 = vmatpush1.msra.mxu0 0.0
        %302 = vmatprep.subr.mxu0 0.0
        %303 = vmatpush1.msra.mxu0 %v250
        %304 = vmatprep.subr.mxu0 0.0
        %305 = vmatpush2.msra.mxu0 0.0
        %306 = vmatprep.subr.mxu0 0.0
        %307 = vmatpush2.msra.mxu0 0.0
        %308 = vmatprep.subr.mxu0 0.0
        %309 = vmatpush2.msra.mxu0 0.0
        %310 = vmatprep.subr.mxu0 0.0
        %311 = vmatpush2.msra.mxu0 0.0
        %312 = vmatprep.subr.mxu0 0.0
        %313 = vmatpush2.msra.mxu0 0.0
        %314 = vmatprep.subr.mxu0 0.0
        %315 = vmatpush2.msra.mxu0 0.0
        %316 = vmatprep.subr.mxu0 0.0
        %317 = vmatpush2.msra.mxu0 0.0
        %318 = vmatprep.subr.mxu0 0.0
        %319 = vmatpush2.msra.mxu0 0.0
        %320 = vmatprep.subr.mxu0 0.0
        %321 = vmatpush2.msra.mxu0 0.0
        %322 = vmatprep.subr.mxu0 0.0
        %323 = vmatpush2.msra.mxu0 0.0
        %324 = vmatprep.subr.mxu0 0.0
        %325 = vmatpush2.msra.mxu0 0.0
        %326 = vmatprep.subr.mxu0 0.0
        %327 = vmatpush2.msra.mxu0 0.0
        %328 = vmatprep.subr.mxu0 0.0
        %329 = vmatpush2.msra.mxu0 0.0
        %330 = vmatprep.subr.mxu0 0.0
        %331 = vmatpush2.msra.mxu0 0.0
        %332 = vmatprep.subr.mxu0 0.0
        %333 = vmatpush2.msra.mxu0 0.0
        %334 = vmatprep.subr.mxu0 0.0
        %335 = vmatpush2.msra.mxu0 0.0
        %336 = vmatprep.mubr.f32.mxu0 0.0
        %337 = vmatmul.mubr.f32.gmra.mxu0 %v267
        %v338 = vpop.f32.mrf.mxu0
        %v339 = vadd.f32 %v258, %v338
        %v340 = vpop.f32.mrf.mxu0
        %341 = vmatprep.mubr.f32.mxu0 0.0
        %342 = vmatmul.mubr.f32.gmra.mxu0 %v270
        %v343 = vpop.f32.mrf.mxu0
        %v344 = vadd.f32 %v263, %v343
        %v345 = vpop.f32.mrf.mxu0
        %346 = vdwg.mxu0
        %v347 = vmul.f32 %v339, %v339
        %v348 = vmul.f32 %v344, %v344
        %349 = vadd.xlane.f32.xlu0 %v339
        %v350 = vpop.xlane.xlu0 %349
        %351 = vadd.xlane.f32.xlu0 %v344
        %v352 = vpop.xlane.xlu0 %351
        %353 = vadd.xlane.f32.xlu0 %v347
        %v354 = vpop.xlane.xlu0 %353
        %355 = vadd.xlane.f32.xlu0 %v348
        %v356 = vpop.xlane.xlu0 %355
        %vm357 = vcmask 7168
        %v358 = vsel %vm357, %v350, 0.0
        %v359 = vsel %vm357, %v352, 0.0
        %v360 = vadd.f32 %v358, %v359
        %361 = vadd.xlane.f32.xlu0 %v360
        %v362 = vpop.xlane.xlu0 %361
        %v363 = vrot.slane %v362, 4
        %v364 = vadd.f32 %v362, %v363
        %v365 = vrot.slane %v364, 2
        %v366 = vadd.f32 %v364, %v365
        %v367 = vrot.slane %v366, 1
        %v368 = vadd.f32 %v366, %v367
        %s369 = vtos %v368
        %v370 = vsel %vm357, %v354, 0.0
        %v371 = vsel %vm357, %v356, 0.0
        %v372 = vadd.f32 %v370, %v371
        %373 = vadd.xlane.f32.xlu0 %v372
        %v374 = vpop.xlane.xlu0 %373
        %v375 = vrot.slane %v374, 4
        %v376 = vadd.f32 %v374, %v375
        %v377 = vrot.slane %v376, 2
        %v378 = vadd.f32 %v376, %v377
        %v379 = vrot.slane %v378, 1
        %v380 = vadd.f32 %v378, %v379
        %s381 = vtos %v380
        %s382 = smul.f32 %s369, 0.00048828125
        %s383 = smul.f32 %s381, 0.00048828125
        %s384 = smul.f32 %s382, %s382
        %s385 = ssub.f32 %s383, %s384
        %s386 = smax.f32 %s385, 0.0
        %v387 = vstv %s382
        %v388 = vsub.f32 %v339, %v387
        %v389 = vsub.f32 %v344, %v387
        %s390 = sadd.f32 %s386, 1e-06
        %v391 = vstv %s390
        %v392 = vrsqrt.pop %v391
        %s393 = vtos %v392
        %v394 = vstv %s393
        %v395 = vmul.f32 %v388, %v394
        %v396 = vmul.f32 %v389, %v394
        %397 = vset.pattern.permute.xlu0 1
        %398 = vperm.xlu0 %397, %v251
        %v399 = vpop.permute.xlu0 %398
        %401 = vset.pattern.permute.xlu0 1
        %402 = vperm.xlu0 %401, %v252
        %v403 = vpop.permute.xlu0 %402
        %v405 = vmul.f32 %v395, %v399
        %v406 = vmul.f32 %v396, %v403
        %407 = vset.pattern.permute.xlu0 2
        %408 = vperm.xlu0 %407, %v251
        %v409 = vpop.permute.xlu0 %408
        %411 = vset.pattern.permute.xlu0 2
        %412 = vperm.xlu0 %411, %v252
        %v413 = vpop.permute.xlu0 %412
        %v415 = vadd.f32 %v405, %v409
        %v416 = vadd.f32 %v406, %v413
        %vm417 = vcmp.gt.f32.partialorder %v415, 0.0
        %vm418 = vcmp.gt.f32.partialorder %v416, 0.0
        %v419 = vmul.f32 %v415, 0.25
        %v420 = vmul.f32 %v416, 0.25
        %v421 = vsel %vm417, %v415, %v419
        %v422 = vsel %vm418, %v416, %v420
        %v423 = vlaneseq
        %v424 = vand.u32 %v423, 127
        %425 = vrot.lane.b32.xlu0 %v421, 2
        %v426 = vpop.permute.xlu0 %425
        %427 = vrot.lane.b32.xlu0 %v422, 2
        %v428 = vpop.permute.xlu0 %427
        %vm429 = vcmp.ge.s32.totalorder %v424, 2
        %v430 = vsel %vm429, 1, 0
        %vm431 = vcmp.eq.s32.totalorder %v430, 1
        %v432 = vsel %vm431, %v426, 0.0
        %v433 = vsel %vm431, %v428, 0.0
        %434 = vrot.lane.b32.xlu0 %v421, 1
        %v435 = vpop.permute.xlu0 %434
        %436 = vrot.lane.b32.xlu0 %v422, 1
        %v437 = vpop.permute.xlu0 %436
        %vm438 = vcmp.ge.s32.totalorder %v424, 1
        %v439 = vsel %vm438, 1, 0
        %vm440 = vcmp.eq.s32.totalorder %v439, 1
        %v441 = vsel %vm440, %v435, 0.0
        %v442 = vsel %vm440, %v437, 0.0
        %443 = vrot.lane.b32.xlu0 %v421, 127
        %v444 = vpop.permute.xlu0 %443
        %445 = vrot.lane.b32.xlu0 %v422, 127
        %v446 = vpop.permute.xlu0 %445
        %vm447 = vcmp.lt.s32.totalorder %v424, 127
        %v448 = vsel %vm447, 1, 0
        %vm449 = vcmp.eq.s32.totalorder %v448, 1
        %v450 = vsel %vm449, %v444, 0.0
        %v451 = vsel %vm449, %v446, 0.0
        %452 = vrot.lane.b32.xlu0 %v421, 126
        %v453 = vpop.permute.xlu0 %452
        %454 = vrot.lane.b32.xlu0 %v422, 126
        %v455 = vpop.permute.xlu0 %454
        %vm456 = vcmp.lt.s32.totalorder %v424, 126
        %v457 = vsel %vm456, 1, 0
        %vm458 = vcmp.eq.s32.totalorder %v457, 1
        %v459 = vsel %vm458, %v453, 0.0
        %v460 = vsel %vm458, %v455, 0.0
        %v461 = vld [vmem:[#allocation2] sm:$0xff]
        %v462 = vld [vmem:[#allocation2 + $0x8] sm:$0xff]
        %463 = vset.pattern.permute.xlu0 3
        %464 = vperm.xlu0 %463, %v251
        %v465 = vpop.permute.xlu0 %464
        %467 = vset.pattern.permute.xlu0 3
        %468 = vperm.xlu0 %467, %v252
        %v469 = vpop.permute.xlu0 %468
        %vm471 = vcmask 654336
        %v473 = vsel %vm471, %v461, 0
        %v476 = vsel %vm471, %v462, 0
        %478 = vmatprep.subr.mxu0 0.0
        %479 = vmatpush1.msra.mxu0 0.0
        %480 = vmatprep.subr.mxu0 0.0
        %481 = vmatpush1.msra.mxu0 0.0
        %482 = vmatprep.subr.mxu0 0.0
        %483 = vmatpush1.msra.mxu0 0.0
        %484 = vmatprep.subr.mxu0 0.0
        %485 = vmatpush1.msra.mxu0 0.0
        %486 = vmatprep.subr.mxu0 0.0
        %487 = vmatpush1.msra.mxu0 0.0
        %488 = vmatprep.subr.mxu0 0.0
        %489 = vmatpush1.msra.mxu0 0.0
        %490 = vmatprep.subr.mxu0 0.0
        %491 = vmatpush1.msra.mxu0 %v460
        %492 = vmatprep.subr.mxu0 0.0
        %493 = vmatpush1.msra.mxu0 %v459
        %494 = vmatprep.subr.mxu0 0.0
        %495 = vmatpush1.msra.mxu0 %v451
        %496 = vmatprep.subr.mxu0 0.0
        %497 = vmatpush1.msra.mxu0 %v450
        %498 = vmatprep.subr.mxu0 0.0
        %499 = vmatpush1.msra.mxu0 %v422
        %500 = vmatprep.subr.mxu0 0.0
        %501 = vmatpush1.msra.mxu0 %v421
        %502 = vmatprep.subr.mxu0 0.0
        %503 = vmatpush1.msra.mxu0 %v442
        %504 = vmatprep.subr.mxu0 0.0
        %505 = vmatpush1.msra.mxu0 %v441
        %506 = vmatprep.subr.mxu0 0.0
        %507 = vmatpush1.msra.mxu0 %v433
        %508 = vmatprep.subr.mxu0 0.0
        %509 = vmatpush1.msra.mxu0 %v432
        %510 = vmatprep.subr.mxu0 0.0
        %511 = vmatpush2.msra.mxu0 0.0
        %512 = vmatprep.subr.mxu0 0.0
        %513 = vmatpush2.msra.mxu0 0.0
        %514 = vmatprep.subr.mxu0 0.0
        %515 = vmatpush2.msra.mxu0 0.0
        %516 = vmatprep.subr.mxu0 0.0
        %517 = vmatpush2.msra.mxu0 0.0
        %518 = vmatprep.subr.mxu0 0.0
        %519 = vmatpush2.msra.mxu0 0.0
        %520 = vmatprep.subr.mxu0 0.0
        %521 = vmatpush2.msra.mxu0 0.0
        %522 = vmatprep.subr.mxu0 0.0
        %523 = vmatpush2.msra.mxu0 0.0
        %524 = vmatprep.subr.mxu0 0.0
        %525 = vmatpush2.msra.mxu0 0.0
        %526 = vmatprep.subr.mxu0 0.0
        %527 = vmatpush2.msra.mxu0 0.0
        %528 = vmatprep.subr.mxu0 0.0
        %529 = vmatpush2.msra.mxu0 0.0
        %530 = vmatprep.subr.mxu0 0.0
        %531 = vmatpush2.msra.mxu0 0.0
        %532 = vmatprep.subr.mxu0 0.0
        %533 = vmatpush2.msra.mxu0 0.0
        %534 = vmatprep.subr.mxu0 0.0
        %535 = vmatpush2.msra.mxu0 0.0
        %536 = vmatprep.subr.mxu0 0.0
        %537 = vmatpush2.msra.mxu0 0.0
        %538 = vmatprep.subr.mxu0 0.0
        %539 = vmatpush2.msra.mxu0 0.0
        %540 = vmatprep.subr.mxu0 0.0
        %541 = vmatpush2.msra.mxu0 0.0
        %542 = vmatprep.mubr.f32.mxu0 0.0
        %543 = vmatmul.mubr.f32.gmra.mxu0 %v473
        %v544 = vpop.f32.mrf.mxu0
        %v545 = vadd.f32 %v465, %v544
        %v546 = vpop.f32.mrf.mxu0
        %547 = vmatprep.mubr.f32.mxu0 0.0
        %548 = vmatmul.mubr.f32.gmra.mxu0 %v476
        %v549 = vpop.f32.mrf.mxu0
        %v550 = vadd.f32 %v469, %v549
        %v551 = vpop.f32.mrf.mxu0
        %552 = vdwg.mxu0
        %v553 = vmul.f32 %v545, %v545
        %v554 = vmul.f32 %v550, %v550
        %555 = vadd.xlane.f32.xlu0 %v545
        %v556 = vpop.xlane.xlu0 %555
        %557 = vadd.xlane.f32.xlu0 %v550
        %v558 = vpop.xlane.xlu0 %557
        %559 = vadd.xlane.f32.xlu0 %v553
        %v560 = vpop.xlane.xlu0 %559
        %561 = vadd.xlane.f32.xlu0 %v554
        %v562 = vpop.xlane.xlu0 %561
        %v563 = vsel %vm357, %v556, 0.0
        %v564 = vsel %vm357, %v558, 0.0
        %v565 = vadd.f32 %v563, %v564
        %566 = vadd.xlane.f32.xlu0 %v565
        %v567 = vpop.xlane.xlu0 %566
        %v568 = vrot.slane %v567, 4
        %v569 = vadd.f32 %v567, %v568
        %v570 = vrot.slane %v569, 2
        %v571 = vadd.f32 %v569, %v570
        %v572 = vrot.slane %v571, 1
        %v573 = vadd.f32 %v571, %v572
        %s574 = vtos %v573
        %v575 = vsel %vm357, %v560, 0.0
        %v576 = vsel %vm357, %v562, 0.0
        %v577 = vadd.f32 %v575, %v576
        %578 = vadd.xlane.f32.xlu0 %v577
        %v579 = vpop.xlane.xlu0 %578
        %v580 = vrot.slane %v579, 4
        %v581 = vadd.f32 %v579, %v580
        %v582 = vrot.slane %v581, 2
        %v583 = vadd.f32 %v581, %v582
        %v584 = vrot.slane %v583, 1
        %v585 = vadd.f32 %v583, %v584
        %s586 = vtos %v585
        %s587 = smul.f32 %s574, 0.00048828125
        %s588 = smul.f32 %s586, 0.00048828125
        %s589 = smul.f32 %s587, %s587
        %s590 = ssub.f32 %s588, %s589
        %s591 = smax.f32 %s590, 0.0
        %v592 = vstv %s587
        %v593 = vsub.f32 %v545, %v592
        %v594 = vsub.f32 %v550, %v592
        %s595 = sadd.f32 %s591, 1e-06
        %v596 = vstv %s595
        %v597 = vrsqrt.pop %v596
        %s598 = vtos %v597
        %v599 = vstv %s598
        %v600 = vmul.f32 %v593, %v599
        %v601 = vmul.f32 %v594, %v599
        %602 = vset.pattern.permute.xlu0 4
        %603 = vperm.xlu0 %602, %v251
        %v604 = vpop.permute.xlu0 %603
        %606 = vset.pattern.permute.xlu0 4
        %607 = vperm.xlu0 %606, %v252
        %v608 = vpop.permute.xlu0 %607
        %v610 = vmul.f32 %v600, %v604
        %v611 = vmul.f32 %v601, %v608
        %612 = vset.pattern.permute.xlu0 5
        %613 = vperm.xlu0 %612, %v251
        %v614 = vpop.permute.xlu0 %613
        %616 = vset.pattern.permute.xlu0 5
        %617 = vperm.xlu0 %616, %v252
        %v618 = vpop.permute.xlu0 %617
        %v620 = vadd.f32 %v610, %v614
        %v621 = vadd.f32 %v611, %v618
        %vm622 = vcmp.gt.f32.partialorder %v620, 0.0
        %vm623 = vcmp.gt.f32.partialorder %v621, 0.0
        %v624 = vmul.f32 %v620, 0.25
        %v625 = vmul.f32 %v621, 0.25
        %v626 = vsel %vm622, %v620, %v624
        %v627 = vsel %vm623, %v621, %v625
        %v628 = vld [vmem:[%s3] sm:$0xff]
        %629 = vset.pattern.permute.xlu0 6
        %630 = vperm.xlu0 %629, %v251
        %v631 = vpop.permute.xlu0 %630
        %vm633 = vcmask 130048
        %v635 = vsel %vm633, %v628, 0
        %637 = vmatprep.subr.mxu0 0.0
        %638 = vmatpush1.msra.mxu0 0.0
        %639 = vmatprep.subr.mxu0 0.0
        %640 = vmatpush1.msra.mxu0 0.0
        %641 = vmatprep.subr.mxu0 0.0
        %642 = vmatpush1.msra.mxu0 0.0
        %643 = vmatprep.subr.mxu0 0.0
        %644 = vmatpush1.msra.mxu0 0.0
        %645 = vmatprep.subr.mxu0 0.0
        %646 = vmatpush1.msra.mxu0 0.0
        %647 = vmatprep.subr.mxu0 0.0
        %648 = vmatpush1.msra.mxu0 0.0
        %649 = vmatprep.subr.mxu0 0.0
        %650 = vmatpush1.msra.mxu0 0.0
        %651 = vmatprep.subr.mxu0 0.0
        %652 = vmatpush1.msra.mxu0 0.0
        %653 = vmatprep.subr.mxu0 0.0
        %654 = vmatpush1.msra.mxu0 0.0
        %655 = vmatprep.subr.mxu0 0.0
        %656 = vmatpush1.msra.mxu0 0.0
        %657 = vmatprep.subr.mxu0 0.0
        %658 = vmatpush1.msra.mxu0 0.0
        %659 = vmatprep.subr.mxu0 0.0
        %660 = vmatpush1.msra.mxu0 0.0
        %661 = vmatprep.subr.mxu0 0.0
        %662 = vmatpush1.msra.mxu0 0.0
        %663 = vmatprep.subr.mxu0 0.0
        %664 = vmatpush1.msra.mxu0 0.0
        %665 = vmatprep.subr.mxu0 0.0
        %666 = vmatpush1.msra.mxu0 %v627
        %667 = vmatprep.subr.mxu0 0.0
        %668 = vmatpush1.msra.mxu0 %v626
        %669 = vmatprep.subr.mxu0 0.0
        %670 = vmatpush2.msra.mxu0 0.0
        %671 = vmatprep.subr.mxu0 0.0
        %672 = vmatpush2.msra.mxu0 0.0
        %673 = vmatprep.subr.mxu0 0.0
        %674 = vmatpush2.msra.mxu0 0.0
        %675 = vmatprep.subr.mxu0 0.0
        %676 = vmatpush2.msra.mxu0 0.0
        %677 = vmatprep.subr.mxu0 0.0
        %678 = vmatpush2.msra.mxu0 0.0
        %679 = vmatprep.subr.mxu0 0.0
        %680 = vmatpush2.msra.mxu0 0.0
        %681 = vmatprep.subr.mxu0 0.0
        %682 = vmatpush2.msra.mxu0 0.0
        %683 = vmatprep.subr.mxu0 0.0
        %684 = vmatpush2.msra.mxu0 0.0
        %685 = vmatprep.subr.mxu0 0.0
        %686 = vmatpush2.msra.mxu0 0.0
        %687 = vmatprep.subr.mxu0 0.0
        %688 = vmatpush2.msra.mxu0 0.0
        %689 = vmatprep.subr.mxu0 0.0
        %690 = vmatpush2.msra.mxu0 0.0
        %691 = vmatprep.subr.mxu0 0.0
        %692 = vmatpush2.msra.mxu0 0.0
        %693 = vmatprep.subr.mxu0 0.0
        %694 = vmatpush2.msra.mxu0 0.0
        %695 = vmatprep.subr.mxu0 0.0
        %696 = vmatpush2.msra.mxu0 0.0
        %697 = vmatprep.subr.mxu0 0.0
        %698 = vmatpush2.msra.mxu0 0.0
        %699 = vmatprep.subr.mxu0 0.0
        %700 = vmatpush2.msra.mxu0 0.0
        %701 = vmatprep.mubr.f32.mxu0 0.0
        %702 = vmatmul.mubr.f32.gmra.mxu0 %v635
        %v703 = vpop.f32.mrf.mxu0
        %v704 = vadd.f32 %v631, %v703
        %v705 = vpop.f32.mrf.mxu0
        %706 = vdwg.mxu0
        %v707 = vmul.f32 %v704, %v704
        %708 = vadd.xlane.f32.xlu0 %v704
        %v709 = vpop.xlane.xlu0 %708
        %710 = vadd.xlane.f32.xlu0 %v707
        %v711 = vpop.xlane.xlu0 %710
        %v712 = vsel %vm357, %v709, 0.0
        %713 = vadd.xlane.f32.xlu0 %v712
        %v714 = vpop.xlane.xlu0 %713
        %v715 = vrot.slane %v714, 4
        %v716 = vadd.f32 %v714, %v715
        %v717 = vrot.slane %v716, 2
        %v718 = vadd.f32 %v716, %v717
        %v719 = vrot.slane %v718, 1
        %v720 = vadd.f32 %v718, %v719
        %s721 = vtos %v720
        %v722 = vsel %vm357, %v711, 0.0
        %723 = vadd.xlane.f32.xlu0 %v722
        %v724 = vpop.xlane.xlu0 %723
        %v725 = vrot.slane %v724, 4
        %v726 = vadd.f32 %v724, %v725
        %v727 = vrot.slane %v726, 2
        %v728 = vadd.f32 %v726, %v727
        %v729 = vrot.slane %v728, 1
        %v730 = vadd.f32 %v728, %v729
        %s731 = vtos %v730
        %s732 = smul.f32 %s721, 0.0009765625
        %s733 = smul.f32 %s731, 0.0009765625
        %s734 = smul.f32 %s732, %s732
        %s735 = ssub.f32 %s733, %s734
        %s736 = smax.f32 %s735, 0.0
        %v737 = vstv %s732
        %v738 = vsub.f32 %v704, %v737
        %s739 = sadd.f32 %s736, 1e-06
        %v740 = vstv %s739
        %v741 = vrsqrt.pop %v740
        %s742 = vtos %v741
        %v743 = vstv %s742
        %v744 = vmul.f32 %v738, %v743
        %745 = vset.pattern.permute.xlu0 7
        %746 = vperm.xlu0 %745, %v251
        %v747 = vpop.permute.xlu0 %746
        %v749 = vmul.f32 %v744, %v747
        %750 = vset.pattern.permute.xlu0 8
        %751 = vperm.xlu0 %750, %v251
        %v752 = vpop.permute.xlu0 %751
        %v754 = vadd.f32 %v749, %v752
        %vm755 = vcmp.gt.f32.partialorder %v754, 0.0
        %v756 = vmul.f32 %v754, 0.25
        %v757 = vsel %vm755, %v754, %v756
        %v758 = vadd.f32 %v757, %v250
        %759 = vst [vmem:[%s245] sm:$0xff] %v758
        %s760 = sand.u32 %s139, 1
        %s761 = scalar_lea.sflag [#allocation4], %s760
        %s762 = sand.u32 %s139, 1
        %s763 = smul.addr %s762, 8
        %s764 = scalar_lea.vmem [#allocation7], %s763
        // Predicated region
        $region49: #{tpu_custom_call.1} parent=39 // pred_check
          %p765 = pneg %p149
        $region50: #{tpu_custom_call.1} parent=39 // pred_check_branch
          %767 = sbr.rel (%p765) target = $region52
        $region51: #{tpu_custom_call.1} parent=39 // pred_region
          %s769 = ssub.s32 128, 128
          %770 = vsyncadd %s761, %s769
          %s771 = smul.addr %s21, 128
          %s772 = scalar_lea.hbm %s5, %s771
          %s774 = sshll.u32 %s764, 4
          %s775 = int_to_ptr.vmem [resolvable:$true] %s774
          %777 = dma.vmem_to_hbm [thread:$0]  %s775, 128, %s772, %s761
        $region52: #{tpu_custom_call.1} parent=39 // pred_fallthru
          _
      $region40: #{tpu_custom_call.1} parent=5 // pred_fallthru
        _
      %p778 = scmp.le.s32.totalorder 2, %s16
      // Predicated region
      $region53: #{tpu_custom_call.1} parent=5 // pred_check
        %p779 = pneg %p778
      $region54: #{tpu_custom_call.1} parent=5 // pred_check_branch
        %781 = sbr.rel (%p779) target = $region56
      $region55: #{tpu_custom_call.1} parent=5 // pred_region
        %s782 = ssub.s32 %s16, 2
        // Predicated region
        $region57: #{tpu_custom_call.1} parent=55 // pred_check
          %p783 = pneg %p155
        $region58: #{tpu_custom_call.1} parent=55 // pred_check_branch
          %785 = sbr.rel (%p783) target = $region60
        $region59: #{tpu_custom_call.1} parent=55 // pred_region
          %s786 = sand.u32 %s140, 1
          %s787 = scalar_lea.sflag [#allocation4], %s786
          %s788 = sand.u32 %s140, 1
          %s789 = smul.addr %s788, 8
          %s790 = scalar_lea.vmem [#allocation7], %s789
          %791 = dma.done %s787, 128
        $region60: #{tpu_custom_call.1} parent=55 // pred_fallthru
          _
      $region56: #{tpu_custom_call.1} parent=5 // pred_fallthru
        _
    $region6: #{tpu_custom_call.1} parent=1 // loop_footer
      %s20 = sadd.s32 1, %s16
    $region7: #{tpu_custom_call.1} parent=1 // loop_footer_branch
      %15 = sbr.rel target = $region3
    $region8: #{tpu_custom_call.1} parent=1 // loop_exit
      _
    %792 = vsyncpa [#allocation3], 1
    %s793 = scalar_lea.sflag [#allocation3], 1
    %794 = vsyncpa %s793, 1
    %795 = vsyncpa [#allocation6], 1
    %796 = vsyncpa [#allocation4], 1
    %s797 = scalar_lea.sflag [#allocation4], 1
    %798 = vsyncpa %s797, 1

</llo_original>
